<compile_context>
chip_gen: v5e
topology: v5e:2x2
jax: 0.10.0
libtpu: 0.0.40
codegen_flags: <defaults>
</compile_context>

<pallas_src>
import functools
import operator

import jax
import jax.numpy as jnp
from jax.experimental import pallas as pl
from jax.experimental.pallas import tpu as pltpu


def _round_up(x, m):
    return ((x + m - 1) // m) * m


# ------------------------------ Pallas kernel ------------------------------

def _tied_head_kernel(x_ref, w_ref, o_ref):
    # x_ref: (TM, D) bf16 row tile of activations
    # w_ref: (D, TN) bf16 column tile of the fused [word | class] weights
    # o_ref: (TM, TN) f32 output tile
    o_ref[...] = jnp.dot(
        x_ref[...], w_ref[...], preferred_element_type=jnp.float32
    )


def tied_head_matmul(x_pad, w_pad, *, tm, tn):
    """x_pad: (M_pad, D_pad) bf16; w_pad: (D_pad, N_pad) bf16 -> (M_pad, N_pad) f32."""
    M, D = x_pad.shape
    D2, N = w_pad.shape
    assert D == D2 and M % tm == 0 and N % tn == 0

    # VMEM per step (double-buffered): 2*(tm*D + D*tn)*2B + 2*(tm*tn)*4B.
    # With tm=tn=256 and D=4096 that's ~8.5 MiB -- comfortably inside the
    # default scoped VMEM on v5e/v6e/v7x, so no vmem_limit_bytes override needed.
    cost = pl.CostEstimate(
        flops=2 * M * N * D,
        transcendentals=0,
        bytes_accessed=(
            x_pad.size * x_pad.dtype.itemsize
            + w_pad.size * w_pad.dtype.itemsize
            + M * N * 4
        ),
    )

    return pl.pallas_call(
        _tied_head_kernel,
        out_shape=jax.ShapeDtypeStruct((M, N), jnp.float32),
        grid_spec=pltpu.PrefetchScalarGridSpec(
            num_scalar_prefetch=0,
            # j (vocab columns) is the inner/fastest axis: the x row-tile block
            # index is independent of j, so it stays resident while the weight
            # column tiles stream through exactly once per row tile.
            grid=(M // tm, N // tn),
            in_specs=[
                pl.BlockSpec((tm, D), lambda i, j: (i, 0)),   # activation row tile
                pl.BlockSpec((D, tn), lambda i, j: (0, j)),   # weight column tile
            ],
            out_specs=pl.BlockSpec((tm, tn), lambda i, j: (i, j)),
        ),
        compiler_params=pltpu.CompilerParams(
            dimension_semantics=("parallel", "parallel"),
        ),
        cost_estimate=cost,
    )(x_pad, w_pad)


# ------------------------------ Module wrapper ------------------------------

class TiedHeadModuleJAX:
    """JAX/Pallas port of TiedHeadModule (forward only)."""

    # Default tiles: TM=256 rows, TN=256 vocab columns (multiple of 256 to fill
    # the v6e/v7x 2x256^2 MXU; also fine on v5e's 4x128^2).
    def __init__(self, tied_emb, input_dim, num_classes, proj_weight=None,
                 *, tm=256, tn=256):
        self.num_words, emb_dim = tied_emb.shape
        self.num_classes = num_classes
        self.out_dim = self.num_words + num_classes
        self._input_dim = input_dim
        self._tm = tm
        self._tn = tn

        if input_dim != emb_dim:
            # nn.Sequential(Linear(input_dim, emb_dim, bias=False), TiedLinear)
            #   x @ P.T @ E.T == x @ (E @ P).T  -- fold the projection once.
            assert proj_weight is not None and proj_weight.shape == (emb_dim, input_dim)
            word_w = jnp.asarray(tied_emb, jnp.float32) @ jnp.asarray(
                proj_weight, jnp.float32)
        else:
            word_w = jnp.asarray(tied_emb, jnp.float32)
        self._word_w = word_w                       # (num_words, input_dim)
        self._w_pad = None

    def set_class_weight(self, class_w):
        assert class_w.shape == (self.num_classes, self._input_dim)
        D, N = self._input_dim, self.out_dim
        d_pad = _round_up(D, 128)
        tn = min(self._tn, _round_up(N, 128))
        n_pad = _round_up(N, tn)

        # Build the lane-dense (D, N) fused weight directly (transpose the two
        # pieces, not the big concat), zero-pad D and N, cast to bf16 and
        # materialize once in HBM.
        w_cat = jnp.concatenate(
            [self._word_w.T, jnp.asarray(class_w, jnp.float32).T], axis=1)
        w_cat = jnp.pad(w_cat, ((0, d_pad - D), (0, n_pad - N)))
        self._w_pad = jax.device_put(w_cat.astype(jnp.bfloat16))
        self._d_pad = d_pad
        self._n_pad = n_pad
        self._tn_eff = tn

    def __call__(self, inp):
        if self._w_pad is None:
            raise ValueError("set_class_weight(...) must be called before forward")
        inp_sz = functools.reduce(operator.mul, inp.shape[:-1], 1)
        x = inp.reshape(inp_sz, self._input_dim).astype(jnp.float32)

        M, D = inp_sz, self._input_dim
        tm = min(self._tm, _round_up(M, 8))
        m_pad = _round_up(M, tm)
        x_pad = jnp.pad(
            x, ((0, m_pad - M), (0, self._d_pad - D))
        ).astype(jnp.bfloat16)

        out_pad = tied_head_matmul(x_pad, self._w_pad, tm=tm, tn=self._tn_eff)
        return out_pad[:M, : self.out_dim]          # float32, (inp_sz, out_dim)


# ------------------------------ Demo / check ------------------------------

if __name__ == "__main__":
    key = jax.random.PRNGKey(0)
    k_x, k_emb, k_cls = jax.random.split(key, 3)

    # Small shapes consistent with the module's forward.  Deliberately NOT
    # multiples of 128 so the padding paths (D, N, M) are exercised.
    B, S = 2, 8                   # -> inp_sz = 16
    input_dim = emb_dim = 32      # tied-embedding path (no extra Linear)
    num_words = 250
    num_classes = 131             # out_dim = 381

    x = jax.random.normal(k_x, (B, S, input_dim), dtype=jnp.float32)
    tied_emb = jax.random.normal(k_emb, (num_words, emb_dim), dtype=jnp.float32) * 0.05
    class_w = jax.random.normal(k_cls, (num_classes, input_dim), dtype=jnp.float32) * 0.05

    mod = TiedHeadModuleJAX(tied_emb, input_dim, num_classes)
    mod.set_class_weight(class_w)

    out = jax.block_until_ready(mod(x))

    # Pure-JAX references.
    x_flat = x.reshape(-1, input_dim)
    # (a) exact f32 reference (mirrors the PyTorch forward) -- loose tolerance
    #     because the kernel computes in bf16 with f32 accumulation.
    ref_f32 = jnp.concatenate([x_flat @ tied_emb.T, x_flat @ class_w.T], axis=1)
    # (b) bf16-input / f32-accumulation reference -- tight tolerance.
    w_cat = jnp.concatenate([tied_emb, class_w], axis=0).T
    ref_bf16 = jnp.dot(x_flat.astype(jnp.bfloat16), w_cat.astype(jnp.bfloat16),
                       preferred_element_type=jnp.float32)

    assert out.shape == (B * S, num_words + num_classes)
    assert out.dtype == jnp.float32
    assert jnp.allclose(out, ref_bf16, atol=1e-3, rtol=1e-3)
    assert jnp.allclose(out, ref_f32, atol=2e-2, rtol=2e-2)

    print("KERNEL_OK")
</pallas_src>

<mosaic_0001>
module attributes {stable_mosaic.version = 11 : i64} {
  func.func @_tied_head_kernel(%arg0: i32, %arg1: i32, %arg2: memref<16x128xbf16, #tpu.memory_space<vmem>>, %arg3: memref<128x256xbf16, #tpu.memory_space<vmem>>, %arg4: memref<16x256xf32, #tpu.memory_space<vmem>>) attributes {dimension_semantics = [#tpu.dimension_semantics<parallel>, #tpu.dimension_semantics<parallel>], iteration_bounds = array<i64: 1, 2>, scalar_prefetch = 0 : i64, scratch_operands = 0 : i64, tpu.core_type = #tpu.core_type<tc>, window_params = [{transform_indices = @transform_0, window_bounds = array<i64: 16, 128>}, {transform_indices = @transform_1, window_bounds = array<i64: 128, 256>}, {transform_indices = @transform_2, window_bounds = array<i64: 16, 256>}]} {
    %c0 = arith.constant 0 : index
    %c0_0 = arith.constant 0 : index
    %0 = vector.load %arg2[%c0, %c0_0] : memref<16x128xbf16, #tpu.memory_space<vmem>>, vector<16x128xbf16>
    %c0_1 = arith.constant 0 : index
    %c0_2 = arith.constant 0 : index
    %1 = vector.load %arg3[%c0_1, %c0_2] : memref<128x256xbf16, #tpu.memory_space<vmem>>, vector<128x256xbf16>
    %cst = arith.constant dense<0.000000e+00> : vector<16x256xf32>
    %2 = tpu.matmul %0, %1, %cst {dimension_numbers = #tpu.dot_dimension_numbers<[1], [0], [0], [1], [0, 0, 1, 1], [], []>} : vector<16x128xbf16>, vector<128x256xbf16>, vector<16x256xf32> -> vector<16x256xf32>
    %c0_3 = arith.constant 0 : index
    %c0_4 = arith.constant 0 : index
    %3 = vector.load %arg4[%c0_3, %c0_4] : memref<16x256xf32, #tpu.memory_space<vmem>>, vector<16x256xf32>
    tpu.vector_store %arg4[%c0_3, %c0_4], %2 {strides = array<i32>} : memref<16x256xf32, #tpu.memory_space<vmem>>, vector<16x256xf32>,
    return
  }
  func.func @transform_0(%arg0: i32, %arg1: i32) -> (i32, i32) {
    %c0_i32 = arith.constant 0 : i32
    %c0_i32_0 = arith.constant 0 : i32
    return %arg0, %c0_i32 : i32, i32
  }
  func.func @transform_1(%arg0: i32, %arg1: i32) -> (i32, i32) {
    %c0_i32 = arith.constant 0 : i32
    %c0_i32_0 = arith.constant 0 : i32
    return %c0_i32, %arg1 : i32, i32
  }
  func.func @transform_2(%arg0: i32, %arg1: i32) -> (i32, i32) {
    %c0_i32 = arith.constant 0 : i32
    return %arg0, %arg1 : i32, i32
  }
}

</mosaic_0001>

<llo_original>
// kernel: tpu_custom_call.1
$region0: #{tpu_custom_call.1}
  #allocation0 [shape = 'u32[]', space=smem, size = 0x4, offset = 0x4, fixed_abs, tag = 'smem constant byte address 0x4 - core index']
  #allocation1 [shape = 'u32[72,128]{1,0:T(1,128)}', space=vmem, size = 0x9000, scoped, tag = 'internal scratch']
  %s0 = inlined_call_operand.hbm [shape: bf16[16,128], index: 0, kind: input, shape index: {}]
  %s1 = inlined_call_operand.hbm [shape: bf16[128,512], index: 1, kind: input, shape index: {}]
  %s2 = inlined_call_operand.hbm [shape: f32[16,512], index: 2, kind: output, shape index: {}]
  %s3 = sld [smem:[#allocation0]]
  $region49: #{tpu_custom_call.1} parent=0
    _
  %s5 = ssub.s32 1, %s3
  %s6 = scalar_select 0, %s5, %s3
  $region1: #{tpu_custom_call.1} parent=0
    #allocation2 [shape = 'u8[4096]{0}', space=vmem, size = 0x1000, scoped, tag = 'input window, operand 0, single buffered']
    #allocation3 [shape = 's32[2]{0}', space=sflag, size = 0x8, scoped, tag = 'scoped memory for tpu_custom_call.1']
    #allocation4 [shape = 's32[2]{0}', space=sflag, size = 0x8, scoped, tag = 'scoped memory for tpu_custom_call.1']
    #allocation5 [shape = 'u8[131072]{0}', space=vmem, size = 0x20000, scoped, tag = 'input window, operand 1']
    #allocation6 [shape = 's32[2]{0}', space=sflag, size = 0x8, scoped, tag = 'scoped memory for tpu_custom_call.1']
    #allocation7 [shape = 'u8[32768]{0}', space=vmem, size = 0x8000, scoped, tag = 'output window, operand 0']
    %7 = vsyncpa [#allocation3], 0
    %8 = vsyncpa [#allocation6], 0
    %s9 = scalar_lea.sflag [#allocation6], 1
    %10 = vsyncpa %s9, 0
    %11 = vsyncpa [#allocation4], 0
    %s12 = scalar_lea.sflag [#allocation4], 1
    %13 = vsyncpa %s12, 0
    loop: start=0, step=1, limit=4
    $region2: #{tpu_custom_call.1} parent=1 // loop_pre_header
      _
    $region3: #{tpu_custom_call.1} parent=1 // loop_header
      %s15 = sphi 0, %s19
      %p16 = scmp.ge.s32.totalorder %s15, 4
      %s22 = sphi 0, %s34
      %s23 = sphi 0, %s30
      %s24 = sphi 0, %s22
      %s25 = sphi 0, %s23
      %s26 = sphi 0, %s24
      %s27 = sphi 0, %s25
      %s37 = sphi 0, %s39
      %s40 = sphi 0, %s37
      %s41 = sphi 0, %s40
      %s57 = sphi 0, %s41
      %s63 = sphi 0, %s65
      %s66 = sphi 0, %s63
      %s67 = sphi 0, %s66
      %s83 = sphi 0, %s67
      %s91 = sphi 0, %s93
      %s94 = sphi 0, %s91
      %s95 = sphi 0, %s94
      %s111 = sphi 0, %s95
    $region4: #{tpu_custom_call.1} parent=1 // loop_header_branch
      %18 = sbr.rel (%p16) target = $region8
    $region5: #{tpu_custom_call.1} parent=1 // loop_body
      %s20 = ssub.s32 %s15, 1
      %s21 = ssub.s32 %s15, 2
      %s28 = sadd.s32 1, %s23
      %p29 = scmp.ge.s32.totalorder %s28, 2
      %s30 = scalar_select %p29, 0, %s28
      %s31 = sadd.s32 1, %s22
      %s32 = scalar_select %p29, %s31, %s22
      %p33 = scmp.ge.s32.totalorder %s32, 1
      %s34 = scalar_select %p33, 0, %s32
      %s35 = ssub.s32 %s22, %s34
      %p36 = scmp.eq.s32.totalorder %s35, 0
      %s38 = sadd.s32 %s37, 1
      %s39 = scalar_select %p36, %s37, %s38
      %p42 = pneg %p36
      %p43 = scmp.eq.s32.totalorder %s15, 1
      %p44 = por %p42, %p43
      %p45 = scmp.ne.s32.totalorder %s37, %s40
      %p46 = scmp.eq.s32.totalorder %s15, 0
      %p47 = por %p45, %p46
      %p48 = scmp.ne.s32.totalorder %s37, %s40
      %p49 = scmp.eq.s32.totalorder %s20, 1
      %p50 = por %p48, %p49
      %p51 = scmp.ne.s32.totalorder %s40, %s41
      %p52 = scmp.eq.s32.totalorder %s20, 0
      %p53 = por %p51, %p52
      %p54 = scmp.ne.s32.totalorder %s40, %s41
      %p55 = scmp.eq.s32.totalorder %s21, 1
      %p56 = por %p54, %p55
      %p58 = scmp.ne.s32.totalorder %s41, %s57
      %p59 = scmp.eq.s32.totalorder %s21, 0
      %p60 = por %p58, %p59
      %s61 = ssub.s32 %s23, %s30
      %p62 = scmp.eq.s32.totalorder %s61, 0
      %s64 = sadd.s32 %s63, 1
      %s65 = scalar_select %p62, %s63, %s64
      %p68 = pneg %p62
      %p69 = scmp.eq.s32.totalorder %s15, 1
      %p70 = por %p68, %p69
      %p71 = scmp.ne.s32.totalorder %s63, %s66
      %p72 = scmp.eq.s32.totalorder %s15, 0
      %p73 = por %p71, %p72
      %p74 = scmp.ne.s32.totalorder %s63, %s66
      %p75 = scmp.eq.s32.totalorder %s20, 1
      %p76 = por %p74, %p75
      %p77 = scmp.ne.s32.totalorder %s66, %s67
      %p78 = scmp.eq.s32.totalorder %s20, 0
      %p79 = por %p77, %p78
      %p80 = scmp.ne.s32.totalorder %s66, %s67
      %p81 = scmp.eq.s32.totalorder %s21, 1
      %p82 = por %p80, %p81
      %p84 = scmp.ne.s32.totalorder %s67, %s83
      %p85 = scmp.eq.s32.totalorder %s21, 0
      %p86 = por %p84, %p85
      %s87 = ssub.s32 %s22, %s34
      %s88 = ssub.s32 %s23, %s30
      %s89 = sor.u32 %s87, %s88
      %p90 = scmp.eq.s32.totalorder %s89, 0
      %s92 = sadd.s32 %s91, 1
      %s93 = scalar_select %p90, %s91, %s92
      %p96 = pneg %p90
      %p97 = scmp.eq.s32.totalorder %s15, 1
      %p98 = por %p96, %p97
      %p99 = scmp.ne.s32.totalorder %s91, %s94
      %p100 = scmp.eq.s32.totalorder %s15, 0
      %p101 = por %p99, %p100
      %p102 = scmp.ne.s32.totalorder %s91, %s94
      %p103 = scmp.eq.s32.totalorder %s20, 1
      %p104 = por %p102, %p103
      %p105 = scmp.ne.s32.totalorder %s94, %s95
      %p106 = scmp.eq.s32.totalorder %s20, 0
      %p107 = por %p105, %p106
      %p108 = scmp.ne.s32.totalorder %s94, %s95
      %p109 = scmp.eq.s32.totalorder %s21, 1
      %p110 = por %p108, %p109
      %p112 = scmp.ne.s32.totalorder %s95, %s111
      %p113 = scmp.eq.s32.totalorder %s21, 0
      %p114 = por %p112, %p113
      %p115 = scmp.le.s32.totalorder 1, %s15
      %p116 = scmp.lt.s32.totalorder %s15, 3
      %p117 = pnand %p115, %p116
      %p118 = pneg %p117
      // Predicated region
      $region9: #{tpu_custom_call.1} parent=5 // pred_check
        _
      $region10: #{tpu_custom_call.1} parent=5 // pred_check_branch
        %120 = sbr.rel (%p117) target = $region12
      $region11: #{tpu_custom_call.1} parent=5 // pred_region
        %s121 = ssub.s32 %s15, 1
        // Predicated region
        $region13: #{tpu_custom_call.1} parent=11 // pred_check
          %p122 = pneg %p53
        $region14: #{tpu_custom_call.1} parent=11 // pred_check_branch
          %124 = sbr.rel (%p122) target = $region16
        $region15: #{tpu_custom_call.1} parent=11 // pred_region
          %s125 = smul.u32 2, %s24
          %127 = vsyncadd [#allocation3], 0
          %s128 = smul.addr %s125, 4
          %s129 = scalar_lea.hbm %s0, %s128
          %s130 = sshll.u32 %s129, 4
          %s131 = int_to_ptr.hbm [resolvable:$true] %s130
          %s132 = sshll.u32 [#allocation2], 4
          %s133 = int_to_ptr.vmem [resolvable:$true] %s132
          %138 = dma.hbm_to_vmem [thread:$0]  %s131, 128, %s133, [#allocation3], 64, 64, 4
        $region16: #{tpu_custom_call.1} parent=11 // pred_fallthru
          _
      $region12: #{tpu_custom_call.1} parent=5 // pred_fallthru
        _
      %p139 = scmp.lt.s32.totalorder %s15, 2
      // Predicated region
      $region17: #{tpu_custom_call.1} parent=5 // pred_check
        %p140 = pneg %p139
      $region18: #{tpu_custom_call.1} parent=5 // pred_check_branch
        %142 = sbr.rel (%p140) target = $region20
      $region19: #{tpu_custom_call.1} parent=5 // pred_region
        // Predicated region
        $region21: #{tpu_custom_call.1} parent=19 // pred_check
          %p143 = pneg %p73
        $region22: #{tpu_custom_call.1} parent=19 // pred_check_branch
          %145 = sbr.rel (%p143) target = $region24
        $region23: #{tpu_custom_call.1} parent=19 // pred_region
          %s146 = sand.u32 %s63, 1
          %s147 = scalar_lea.sflag [#allocation6], %s146
          %s148 = sand.u32 %s63, 1
          %s149 = smul.addr %s148, 128
          %s150 = scalar_lea.vmem [#allocation5], %s149
          %s151 = smul.u32 2, %s23
          %153 = vsyncadd %s147, 0
          %s154 = smul.addr %s151, 4
          %s155 = scalar_lea.hbm %s1, %s154
          %s156 = sshll.u32 %s155, 4
          %s157 = int_to_ptr.hbm [resolvable:$true] %s156
          %s158 = sshll.u32 %s150, 4
          %s159 = int_to_ptr.vmem [resolvable:$true] %s158
          %164 = dma.hbm_to_vmem [thread:$0]  %s157, 2048, %s159, %s147, 256, 128, 8
        $region24: #{tpu_custom_call.1} parent=19 // pred_fallthru
          _
      $region20: #{tpu_custom_call.1} parent=5 // pred_fallthru
        _
      %p165 = scmp.le.s32.totalorder 1, %s15
      %p166 = scmp.lt.s32.totalorder %s15, 3
      %p167 = pnand %p165, %p166
      %p168 = pneg %p167
      // Predicated region
      $region25: #{tpu_custom_call.1} parent=5 // pred_check
        _
      $region26: #{tpu_custom_call.1} parent=5 // pred_check_branch
        %170 = sbr.rel (%p167) target = $region28
      $region27: #{tpu_custom_call.1} parent=5 // pred_region
        %s171 = ssub.s32 %s15, 1
        // Predicated region
        $region29: #{tpu_custom_call.1} parent=27 // pred_check
          %p172 = pneg %p53
        $region30: #{tpu_custom_call.1} parent=27 // pred_check_branch
          %174 = sbr.rel (%p172) target = $region32
        $region31: #{tpu_custom_call.1} parent=27 // pred_region
          %176 = dma.done [#allocation3], 128
        $region32: #{tpu_custom_call.1} parent=27 // pred_fallthru
          _
        %s177 = sand.u32 %s66, 1
        %s178 = scalar_lea.sflag [#allocation6], %s177
        %s179 = sand.u32 %s66, 1
        %s180 = smul.addr %s179, 128
        %s181 = scalar_lea.vmem [#allocation5], %s180
        // Predicated region
        $region33: #{tpu_custom_call.1} parent=27 // pred_check
          %p182 = pneg %p79
        $region34: #{tpu_custom_call.1} parent=27 // pred_check_branch
          %184 = sbr.rel (%p182) target = $region36
        $region35: #{tpu_custom_call.1} parent=27 // pred_region
          %186 = dma.done %s178, 2048
        $region36: #{tpu_custom_call.1} parent=27 // pred_fallthru
          _
        %p187 = pneg %p53
        %p188 = pneg %p50
        %s189 = sand.u32 %s66, 1
        %s190 = scalar_lea.sflag [#allocation6], %s189
        %s191 = sand.u32 %s66, 1
        %s192 = smul.addr %s191, 128
        %s193 = scalar_lea.vmem [#allocation5], %s192
        %p194 = pneg %p79
        %p195 = pneg %p76
        %p196 = pneg %p107
        %p197 = pneg %p104
        %s198 = sand.u32 %s94, 1
        %s199 = scalar_lea.sflag [#allocation4], %s198
        %s200 = sand.u32 %s94, 1
        %s201 = smul.addr %s200, 32
        %s202 = scalar_lea.vmem [#allocation7], %s201
        %s203 = smul.u32 2, %s24
        %s204 = smul.u32 2, %s25
        %s205 = smul.u32 2, %s24
        %s206 = smul.u32 2, %s25
        %v207 = vld [vmem:[#allocation2] sm:$0xf]
        %v208 = vld [vmem:[#allocation2 + $0x4] sm:$0xf]
        %v209 = vld [vmem:[%s181] sm:$0xff]
        %v210 = vld [vmem:[%s181 + $0x8] sm:$0xff]
        %v211 = vld [vmem:[%s181 + $0x10] sm:$0xff]
        %v212 = vld [vmem:[%s181 + $0x18] sm:$0xff]
        %v213 = vld [vmem:[%s181 + $0x20] sm:$0xff]
        %v214 = vld [vmem:[%s181 + $0x28] sm:$0xff]
        %v215 = vld [vmem:[%s181 + $0x30] sm:$0xff]
        %v216 = vld [vmem:[%s181 + $0x38] sm:$0xff]
        %v217 = vld [vmem:[%s181 + $0x40] sm:$0xff]
        %v218 = vld [vmem:[%s181 + $0x48] sm:$0xff]
        %v219 = vld [vmem:[%s181 + $0x50] sm:$0xff]
        %v220 = vld [vmem:[%s181 + $0x58] sm:$0xff]
        %v221 = vld [vmem:[%s181 + $0x60] sm:$0xff]
        %v222 = vld [vmem:[%s181 + $0x68] sm:$0xff]
        %v223 = vld [vmem:[%s181 + $0x70] sm:$0xff]
        %v224 = vld [vmem:[%s181 + $0x78] sm:$0xff]
        %v227 = vunpack.c.l.b16 %v207
        %v228 = vunpack.c.l.b16 %v208
        %v229 = vpack.c.b16 %v228, %v227
        %v247 = vunpack.c.l.b16 %v209
        %v248 = vunpack.c.h.b16 %v209
        %v249 = vunpack.c.l.b16 %v210
        %v250 = vunpack.c.h.b16 %v210
        %v251 = vunpack.c.l.b16 %v211
        %v252 = vunpack.c.h.b16 %v211
        %v253 = vunpack.c.l.b16 %v212
        %v254 = vunpack.c.h.b16 %v212
        %v255 = vunpack.c.l.b16 %v213
        %v256 = vunpack.c.h.b16 %v213
        %v257 = vunpack.c.l.b16 %v214
        %v258 = vunpack.c.h.b16 %v214
        %v259 = vunpack.c.l.b16 %v215
        %v260 = vunpack.c.h.b16 %v215
        %v261 = vunpack.c.l.b16 %v216
        %v262 = vunpack.c.h.b16 %v216
        %v263 = vunpack.c.l.b16 %v217
        %v264 = vunpack.c.h.b16 %v217
        %v265 = vunpack.c.l.b16 %v218
        %v266 = vunpack.c.h.b16 %v218
        %v267 = vunpack.c.l.b16 %v219
        %v268 = vunpack.c.h.b16 %v219
        %v269 = vunpack.c.l.b16 %v220
        %v270 = vunpack.c.h.b16 %v220
        %v271 = vunpack.c.l.b16 %v221
        %v272 = vunpack.c.h.b16 %v221
        %v273 = vunpack.c.l.b16 %v222
        %v274 = vunpack.c.h.b16 %v222
        %v275 = vunpack.c.l.b16 %v223
        %v276 = vunpack.c.h.b16 %v223
        %v277 = vunpack.c.l.b16 %v224
        %v278 = vunpack.c.h.b16 %v224
        %v279 = vpack.c.b16 %v249, %v247
        %v280 = vpack.c.b16 %v250, %v248
        %v281 = vpack.c.b16 %v253, %v251
        %v282 = vpack.c.b16 %v254, %v252
        %v283 = vpack.c.b16 %v257, %v255
        %v284 = vpack.c.b16 %v258, %v256
        %v285 = vpack.c.b16 %v261, %v259
        %v286 = vpack.c.b16 %v262, %v260
        %v287 = vpack.c.b16 %v265, %v263
        %v288 = vpack.c.b16 %v266, %v264
        %v289 = vpack.c.b16 %v269, %v267
        %v290 = vpack.c.b16 %v270, %v268
        %v291 = vpack.c.b16 %v273, %v271
        %v292 = vpack.c.b16 %v274, %v272
        %v293 = vpack.c.b16 %v277, %v275
        %v294 = vpack.c.b16 %v278, %v276
        %311 = vmatpush.bf16.msra.mxu0 %v293
        %312 = vmatpush.bf16.msra.mxu0 %v291
        %313 = vmatpush.bf16.msra.mxu0 %v289
        %314 = vmatpush.bf16.msra.mxu0 %v287
        %315 = vmatpush.bf16.msra.mxu0 %v285
        %316 = vmatpush.bf16.msra.mxu0 %v283
        %317 = vmatpush.bf16.msra.mxu0 %v281
        %318 = vmatpush.bf16.msra.mxu0 %v279
        %319 = vmatmul.bf16.gmra.mxu0 %v229
        %v320 = vpop.f32.mrf.mxu0
        %v321 = vadd.f32 0.0, %v320
        %v322 = vpop.f32.mrf.mxu0
        %v323 = vadd.f32 0.0, %v322
        %324 = vdwg.mxu0
        %325 = vmatpush.bf16.msra.mxu0 %v294
        %326 = vmatpush.bf16.msra.mxu0 %v292
        %327 = vmatpush.bf16.msra.mxu0 %v290
        %328 = vmatpush.bf16.msra.mxu0 %v288
        %329 = vmatpush.bf16.msra.mxu0 %v286
        %330 = vmatpush.bf16.msra.mxu0 %v284
        %331 = vmatpush.bf16.msra.mxu0 %v282
        %332 = vmatpush.bf16.msra.mxu0 %v280
        %333 = vmatmul.bf16.gmra.mxu0 %v229
        %v334 = vpop.f32.mrf.mxu0
        %v335 = vadd.f32 0.0, %v334
        %v336 = vpop.f32.mrf.mxu0
        %v337 = vadd.f32 0.0, %v336
        %338 = vdwg.mxu0
        %339 = vst [vmem:[%s202] sm:$0xff] %v321
        %340 = vst [vmem:[%s202 + $0x8] sm:$0xff] %v335
        %341 = vst [vmem:[%s202 + $0x10] sm:$0xff] %v323
        %342 = vst [vmem:[%s202 + $0x18] sm:$0xff] %v337
        %s343 = sand.u32 %s94, 1
        %s344 = scalar_lea.sflag [#allocation4], %s343
        %s345 = sand.u32 %s94, 1
        %s346 = smul.addr %s345, 32
        %s347 = scalar_lea.vmem [#allocation7], %s346
        // Predicated region
        $region37: #{tpu_custom_call.1} parent=27 // pred_check
          %p348 = pneg %p104
        $region38: #{tpu_custom_call.1} parent=27 // pred_check_branch
          %350 = sbr.rel (%p348) target = $region40
        $region39: #{tpu_custom_call.1} parent=27 // pred_region
          %s351 = smul.u32 2, %s24
          %s352 = smul.u32 2, %s25
          %354 = vsyncadd %s344, 0
          %s355 = smul.addr %s351, 4
          %s356 = sadd.s32 %s352, %s355
          %s357 = smul.addr %s356, 8
          %s358 = scalar_lea.hbm %s2, %s357
          %s359 = sshll.u32 %s347, 4
          %s360 = int_to_ptr.vmem [resolvable:$true] %s359
          %s361 = sshll.u32 %s358, 4
          %s362 = int_to_ptr.hbm [resolvable:$true] %s361
          %367 = dma.vmem_to_hbm [thread:$0]  %s360, 512, %s362, %s344, 256, 512, 16
        $region40: #{tpu_custom_call.1} parent=27 // pred_fallthru
          _
      $region28: #{tpu_custom_call.1} parent=5 // pred_fallthru
        _
      %p368 = scmp.le.s32.totalorder 2, %s15
      // Predicated region
      $region41: #{tpu_custom_call.1} parent=5 // pred_check
        %p369 = pneg %p368
      $region42: #{tpu_custom_call.1} parent=5 // pred_check_branch
        %371 = sbr.rel (%p369) target = $region44
      $region43: #{tpu_custom_call.1} parent=5 // pred_region
        %s372 = ssub.s32 %s15, 2
        // Predicated region
        $region45: #{tpu_custom_call.1} parent=43 // pred_check
          %p373 = pneg %p110
        $region46: #{tpu_custom_call.1} parent=43 // pred_check_branch
          %375 = sbr.rel (%p373) target = $region48
        $region47: #{tpu_custom_call.1} parent=43 // pred_region
          %s376 = sand.u32 %s95, 1
          %s377 = scalar_lea.sflag [#allocation4], %s376
          %s378 = sand.u32 %s95, 1
          %s379 = smul.addr %s378, 32
          %s380 = scalar_lea.vmem [#allocation7], %s379
          %382 = dma.done %s377, 512
        $region48: #{tpu_custom_call.1} parent=43 // pred_fallthru
          _
      $region44: #{tpu_custom_call.1} parent=5 // pred_fallthru
        _
    $region6: #{tpu_custom_call.1} parent=1 // loop_footer
      %s19 = sadd.s32 1, %s15
    $region7: #{tpu_custom_call.1} parent=1 // loop_footer_branch
      %14 = sbr.rel target = $region3
    $region8: #{tpu_custom_call.1} parent=1 // loop_exit
      _
    %383 = vsyncpa [#allocation3], 1
    %s384 = scalar_lea.sflag [#allocation3], 1
    %385 = vsyncpa %s384, 1
    %386 = vsyncpa [#allocation6], 1
    %s387 = scalar_lea.sflag [#allocation6], 1
    %388 = vsyncpa %s387, 1
    %389 = vsyncpa [#allocation4], 1
    %s390 = scalar_lea.sflag [#allocation4], 1
    %391 = vsyncpa %s390, 1

</llo_original>
